<compile_context>
chip_gen: v6e
topology: v6e:2x2x1
jax: 0.10.0
libtpu: 0.0.40
codegen_flags: <defaults>
</compile_context>

<pallas_src>
import jax
import jax.numpy as jnp
from jax.experimental import pallas as pl
from jax.experimental.pallas import tpu as pltpu

SIGMA = 0.4

IN_FEATURES = 2
HIDDEN = 32
OUT_FEATURES = 3

# Lane-axis batch tile. Per-step VMEM (double-buffered [2,tb] x + [3,tb] out
# tiles, resident weights, [32,tb] intermediate) is ~3 MiB at tb=16384 —
# comfortably under the 32 MiB default scoped limit on v7x (64 MiB physical)
# and v5e/v6e (128 MiB physical).
_BATCH_TILE = 16384


def _policy_kernel(x_ref, w1_ref, w2_ref, o_ref):
    """Fused MLP + softmax on one batch tile (batch on the LANE axis).

    x_ref  : [2, TB]   transposed input tile
    w1_ref : [32, 2]   affine1 weight, torch [out, in] layout (resident)
    w2_ref : [3, 32]   affine2 weight, torch [out, in] layout (resident)
    o_ref  : [3, TB]   softmax probabilities (class on sublanes, batch on lanes)
    """
    w1 = w1_ref[...]                                   # [32, 2]
    x0 = x_ref[0:1, :]                                 # [1, TB]
    x1 = x_ref[1:2, :]                                 # [1, TB]

    # affine1: K=2 -> two dense VPU multiply-adds (no MXU pass wasted).
    # [32,1] lane-splat * [1,TB] sublane-broadcast -> [32, TB]
    h = w1[:, 0:1] * x0 + w1[:, 1:2] * x1              # [32, TB]
    h = jnp.maximum(h, 0.0)                            # ReLU

    # affine2: single MXU pass, N=TB is column-dense.   [3,32] @ [32,TB]
    scores = jnp.dot(w2_ref[...], h, preferred_element_type=jnp.float32)  # [3, TB]

    # Numerically-stable softmax over the 3 classes via dense VPU ops
    # (explicit sublane slices; no XLU cross-lane reduction needed).
    s0 = scores[0:1, :]
    s1 = scores[1:2, :]
    s2 = scores[2:3, :]
    m = jnp.maximum(jnp.maximum(s0, s1), s2)           # [1, TB]
    e = jnp.exp(scores - m)                            # [3, TB]
    denom = e[0:1, :] + e[1:2, :] + e[2:3, :]          # [1, TB]
    inv = pl.reciprocal(denom, approx=False)           # exact EUP divide
    o_ref[...] = e * inv                               # single dense block store


def policy_forward(x, w1, w2):
    """x: [B, 2] f32, w1: [32, 2] f32 (torch layout), w2: [3, 32] f32 (torch layout)
    -> [B, 3] softmax probabilities."""
    B, f_in = x.shape
    hidden, f_in_w = w1.shape
    n_out, hidden_w = w2.shape
    assert f_in == f_in_w and hidden == hidden_w

    x = x.astype(jnp.float32)
    w1 = w1.astype(jnp.float32)
    w2 = w2.astype(jnp.float32)

    # Lane-dense layout: batch on lanes. Pad only the batch axis to a multiple
    # of 128 (the lane width) / the batch tile.
    xt = x.T                                            # [2, B]
    if B <= _BATCH_TILE:
        tb = max(128, ((B + 127) // 128) * 128)
    else:
        tb = _BATCH_TILE
    bp = ((B + tb - 1) // tb) * tb
    if bp != B:
        xt = jnp.pad(xt, ((0, 0), (0, bp - B)))
    n_tiles = bp // tb

    cost = pl.CostEstimate(
        flops=B * (2 * f_in * hidden + 2 * hidden * n_out),
        transcendentals=B * (n_out + 1),
        bytes_accessed=bp * (f_in + n_out) * 4 + (hidden * f_in + n_out * hidden) * 4,
    )

    out_t = pl.pallas_call(
        _policy_kernel,
        out_shape=jax.ShapeDtypeStruct((n_out, bp), jnp.float32),
        grid=(n_tiles,),
        in_specs=[
            pl.BlockSpec((f_in, tb), lambda i: (0, i)),        # x^T: tiled over batch (lanes)
            pl.BlockSpec((hidden, f_in), lambda i: (0, 0)),    # w1: resident
            pl.BlockSpec((n_out, hidden), lambda i: (0, 0)),   # w2: resident
        ],
        out_specs=pl.BlockSpec((n_out, tb), lambda i: (0, i)),
        compiler_params=pltpu.CompilerParams(
            # TODO(synk): if an xprof trace shows one TC idle on v7x, switch to
            # CORE_PARALLEL over an explicit size-2 core axis.
            dimension_semantics=("parallel",),
        ),
        cost_estimate=cost,
    )(xt, w1, w2)

    out = out_t[:, :B].T                                # back to [B, 3]
    return out


def init_policy_params(rng_seeds):
    """Deterministic synthetic init mirroring the genetic perturbation scheme.

    rng_seeds: list of (seed, sigma) tuples. The first seed gives the base
    weights; each subsequent (seed, sigma) adds N(0, sigma) noise to every
    parameter. Weights are returned in torch [out, in] layout.
    """
    # TODO(synk): bit-exact torch.manual_seed RNG streams are not reproducible
    # in JAX; this init is structurally equivalent (uniform Kaiming bound +
    # additive Gaussian perturbations), not numerically identical to torch.
    base_seed = rng_seeds[0][0]
    k1, k2 = jax.random.split(jax.random.PRNGKey(base_seed))
    bound1 = 1.0 / (IN_FEATURES ** 0.5)
    bound2 = 1.0 / (HIDDEN ** 0.5)
    w1 = jax.random.uniform(k1, (HIDDEN, IN_FEATURES), jnp.float32, -bound1, bound1)
    w2 = jax.random.uniform(k2, (OUT_FEATURES, HIDDEN), jnp.float32, -bound2, bound2)

    for seed, sigma in rng_seeds[1:]:
        kk1, kk2 = jax.random.split(jax.random.PRNGKey(seed))
        w1 = w1 + sigma * jax.random.normal(kk1, w1.shape, jnp.float32)
        w2 = w2 + sigma * jax.random.normal(kk2, w2.shape, jnp.float32)
    return w1, w2


def _reference(x, w1, w2):
    return jax.nn.softmax(jnp.maximum(x @ w1.T, 0.0) @ w2.T, axis=1)


if __name__ == "__main__":
    # deterministic parameters (base seed + one genetic perturbation)
    rng_seeds = [(0, SIGMA), (7, SIGMA)]
    w1, w2 = init_policy_params(rng_seeds)

    # deterministic small input: batch=2, features=2 (a 2-D observation)
    key = jax.random.PRNGKey(0)
    x = jax.random.normal(key, (2, IN_FEATURES), jnp.float32)

    probs = jax.block_until_ready(policy_forward(x, w1, w2))

    ref = _reference(x, w1, w2)
    assert probs.shape == (2, OUT_FEATURES)
    assert jnp.allclose(probs, ref, atol=1e-5, rtol=1e-5)
    assert jnp.allclose(jnp.sum(probs, axis=1), 1.0, atol=1e-5)

    # larger batch to exercise the multi-tile grid path and batch padding
    xb = jax.random.normal(jax.random.PRNGKey(1), (_BATCH_TILE + 300, IN_FEATURES),
                           jnp.float32)
    probs_b = jax.block_until_ready(policy_forward(xb, w1, w2))
    ref_b = _reference(xb, w1, w2)
    assert probs_b.shape == (xb.shape[0], OUT_FEATURES)
    assert jnp.allclose(probs_b, ref_b, atol=1e-5, rtol=1e-5)

    print("KERNEL_OK")
</pallas_src>

<mosaic_0001>
module attributes {stable_mosaic.version = 11 : i64} {
  func.func @_policy_kernel(%arg0: i32, %arg1: memref<2x128xf32, #tpu.memory_space<vmem>>, %arg2: memref<32x2xf32, #tpu.memory_space<vmem>>, %arg3: memref<3x32xf32, #tpu.memory_space<vmem>>, %arg4: memref<3x128xf32, #tpu.memory_space<vmem>>) attributes {dimension_semantics = [#tpu.dimension_semantics<parallel>], iteration_bounds = array<i64: 1>, scalar_prefetch = 0 : i64, scratch_operands = 0 : i64, tpu.core_type = #tpu.core_type<tc>, window_params = [{transform_indices = @transform_0, window_bounds = array<i64: 2, 128>}, {pipeline_mode = #tpu.pipeline_mode<synchronous>, transform_indices = @transform_1, window_bounds = array<i64: 32, 2>}, {pipeline_mode = #tpu.pipeline_mode<synchronous>, transform_indices = @transform_2, window_bounds = array<i64: 3, 32>}, {transform_indices = @transform_3, window_bounds = array<i64: 3, 128>}]} {
    %c0 = arith.constant 0 : index
    %c0_0 = arith.constant 0 : index
    %0 = vector.load %arg2[%c0, %c0_0] : memref<32x2xf32, #tpu.memory_space<vmem>>, vector<32x2xf32>
    %c0_1 = arith.constant 0 : index
    %c0_2 = arith.constant 0 : index
    %1 = vector.load %arg1[%c0_1, %c0_2] : memref<2x128xf32, #tpu.memory_space<vmem>>, vector<1x128xf32>
    %c1 = arith.constant 1 : index
    %c0_3 = arith.constant 0 : index
    %2 = vector.load %arg1[%c1, %c0_3] : memref<2x128xf32, #tpu.memory_space<vmem>>, vector<1x128xf32>
    %3 = vector.extract_strided_slice %0 {offsets = [0, 0], sizes = [32, 1], strides = [1, 1]} : vector<32x2xf32> to vector<32x1xf32>
    %4 = vector.broadcast %3 : vector<32x1xf32> to vector<32x128xf32>
    %5 = vector.broadcast %1 : vector<1x128xf32> to vector<32x128xf32>
    %6 = arith.mulf %4, %5 : vector<32x128xf32>
    %7 = vector.extract_strided_slice %0 {offsets = [0, 1], sizes = [32, 1], strides = [1, 1]} : vector<32x2xf32> to vector<32x1xf32>
    %8 = vector.broadcast %7 : vector<32x1xf32> to vector<32x128xf32>
    %9 = vector.broadcast %2 : vector<1x128xf32> to vector<32x128xf32>
    %10 = arith.mulf %8, %9 : vector<32x128xf32>
    %11 = arith.addf %6, %10 : vector<32x128xf32>
    %cst = arith.constant 0.000000e+00 : f32
    %12 = vector.broadcast %cst : f32 to vector<32x128xf32>
    %13 = arith.maximumf %11, %12 : vector<32x128xf32>
    %c0_4 = arith.constant 0 : index
    %c0_5 = arith.constant 0 : index
    %14 = vector.load %arg3[%c0_4, %c0_5] : memref<3x32xf32, #tpu.memory_space<vmem>>, vector<3x32xf32>
    %cst_6 = arith.constant dense<0.000000e+00> : vector<3x128xf32>
    %15 = tpu.matmul %14, %13, %cst_6 {dimension_numbers = #tpu.dot_dimension_numbers<[1], [0], [0], [1], [0, 0, 1, 1], [], []>} : vector<3x32xf32>, vector<32x128xf32>, vector<3x128xf32> -> vector<3x128xf32>
    %16 = vector.extract_strided_slice %15 {offsets = [0, 0], sizes = [1, 128], strides = [1, 1]} : vector<3x128xf32> to vector<1x128xf32>
    %17 = vector.extract_strided_slice %15 {offsets = [1, 0], sizes = [1, 128], strides = [1, 1]} : vector<3x128xf32> to vector<1x128xf32>
    %18 = vector.extract_strided_slice %15 {offsets = [2, 0], sizes = [1, 128], strides = [1, 1]} : vector<3x128xf32> to vector<1x128xf32>
    %19 = arith.maximumf %16, %17 : vector<1x128xf32>
    %20 = arith.maximumf %19, %18 : vector<1x128xf32>
    %21 = vector.broadcast %20 : vector<1x128xf32> to vector<3x128xf32>
    %22 = arith.subf %15, %21 : vector<3x128xf32>
    %23 = math.exp %22 : vector<3x128xf32>
    %24 = vector.extract_strided_slice %23 {offsets = [0, 0], sizes = [1, 128], strides = [1, 1]} : vector<3x128xf32> to vector<1x128xf32>
    %25 = vector.extract_strided_slice %23 {offsets = [1, 0], sizes = [1, 128], strides = [1, 1]} : vector<3x128xf32> to vector<1x128xf32>
    %26 = arith.addf %24, %25 : vector<1x128xf32>
    %27 = vector.extract_strided_slice %23 {offsets = [2, 0], sizes = [1, 128], strides = [1, 1]} : vector<3x128xf32> to vector<1x128xf32>
    %28 = arith.addf %26, %27 : vector<1x128xf32>
    %29 = tpu.reciprocal %28 : vector<1x128xf32> -> vector<1x128xf32>
    %30 = vector.broadcast %29 : vector<1x128xf32> to vector<3x128xf32>
    %31 = arith.mulf %23, %30 : vector<3x128xf32>
    %c0_7 = arith.constant 0 : index
    %c0_8 = arith.constant 0 : index
    %32 = vector.load %arg4[%c0_7, %c0_8] : memref<3x128xf32, #tpu.memory_space<vmem>>, vector<3x128xf32>
    tpu.vector_store %arg4[%c0_7, %c0_8], %31 {strides = array<i32>} : memref<3x128xf32, #tpu.memory_space<vmem>>, vector<3x128xf32>,
    return
  }
  func.func @transform_0(%arg0: i32) -> (i32, i32) {
    %c0_i32 = arith.constant 0 : i32
    %c0_i32_0 = arith.constant 0 : i32
    return %c0_i32, %arg0 : i32, i32
  }
  func.func @transform_1(%arg0: i32) -> (i32, i32) {
    %c0_i32 = arith.constant 0 : i32
    %c0_i32_0 = arith.constant 0 : i32
    %c0_i32_1 = arith.constant 0 : i32
    return %c0_i32, %c0_i32_0 : i32, i32
  }
  func.func @transform_2(%arg0: i32) -> (i32, i32) {
    %c0_i32 = arith.constant 0 : i32
    %c0_i32_0 = arith.constant 0 : i32
    %c0_i32_1 = arith.constant 0 : i32
    return %c0_i32, %c0_i32_0 : i32, i32
  }
  func.func @transform_3(%arg0: i32) -> (i32, i32) {
    %c0_i32 = arith.constant 0 : i32
    %c0_i32_0 = arith.constant 0 : i32
    return %c0_i32, %arg0 : i32, i32
  }
}

</mosaic_0001>

<llo_original>
// kernel: tpu_custom_call.1
$region0: #{tpu_custom_call.1}
  #allocation0 [shape = 'u32[]', space=smem, size = 0x4, offset = 0x4, fixed_abs, tag = 'smem constant byte address 0x4 - core index']
  #allocation1 [shape = 'u32[144,128]{1,0:T(1,128)}', space=vmem, size = 0x12000, scoped, tag = 'internal scratch']
  %s0 = inlined_call_operand.vmem [shape: f32[2,128], index: 0, kind: input, shape index: {}]
  %s1 = inlined_call_operand.vmem [shape: f32[32,2], index: 1, kind: input, shape index: {}]
  %s2 = inlined_call_operand.vmem [shape: f32[3,32], index: 2, kind: input, shape index: {}]
  %s3 = inlined_call_operand.hbm [shape: f32[3,128], index: 3, kind: output, shape index: {}]
  %s4 = sld [smem:[#allocation0]]
  $region22: #{tpu_custom_call.1} parent=0
    _
  %s6 = ssub.s32 1, %s4
  %s7 = scalar_select 0, %s6, %s4
  $region1: #{tpu_custom_call.1} parent=0
    #allocation2 [shape = 'u8[2048]{0}', space=vmem, size = 0x800, scoped, tag = 'output window, operand 0, single buffered']
    #allocation3 [shape = 's32[1]{0}', space=sflag, size = 0x4, scoped, tag = 'scoped memory for tpu_custom_call.1']
    %8 = vsyncpa [#allocation3], 0
    // Predicated region
    $region2: #{tpu_custom_call.1} parent=1 // pred_check
      _
    $region3: #{tpu_custom_call.1} parent=1 // pred_check_branch
      %10 = sbr.rel (0) target = $region5
    $region4: #{tpu_custom_call.1} parent=1 // pred_region
      _
    $region5: #{tpu_custom_call.1} parent=1 // pred_fallthru
      _
    // Predicated region
    $region6: #{tpu_custom_call.1} parent=1 // pred_check
      _
    $region7: #{tpu_custom_call.1} parent=1 // pred_check_branch
      %12 = sbr.rel (0) target = $region9
    $region8: #{tpu_custom_call.1} parent=1 // pred_region
      _
    $region9: #{tpu_custom_call.1} parent=1 // pred_fallthru
      _
    // Predicated region
    $region10: #{tpu_custom_call.1} parent=1 // pred_check
      _
    $region11: #{tpu_custom_call.1} parent=1 // pred_check_branch
      %14 = sbr.rel (0) target = $region13
    $region12: #{tpu_custom_call.1} parent=1 // pred_region
      _
    $region13: #{tpu_custom_call.1} parent=1 // pred_fallthru
      _
    %v15 = vld [vmem:[%s1] sm:$0xff]
    %v16 = vld [vmem:[%s1 + $0x8] sm:$0xff]
    %v17 = vld [vmem:[%s1 + $0x10] sm:$0xff]
    %v18 = vld [vmem:[%s1 + $0x18] sm:$0xff]
    %v19 = vld [vmem:[%s0] sm:$0x1]
    %v20 = vld [vmem:[%s0 + $0x1] sm:$0x1]
    %22 = vset.pattern.permute.xlu0 0
    %23 = vperm.xlu0 %22, %v15
    %v24 = vpop.permute.xlu0 %23
    %27 = vset.pattern.permute.xlu0 0
    %28 = vperm.xlu0 %27, %v16
    %v29 = vpop.permute.xlu0 %28
    %32 = vset.pattern.permute.xlu0 0
    %33 = vperm.xlu0 %32, %v17
    %v34 = vpop.permute.xlu0 %33
    %37 = vset.pattern.permute.xlu0 0
    %38 = vperm.xlu0 %37, %v18
    %v39 = vpop.permute.xlu0 %38
    %v41 = vlaneseq
    %v42 = vshrl.u32 %v41, 7
    %v43 = vsub.s32 0, %v42
    %v44 = vrot.slane %v19, %v43
    %v45 = vmul.f32 %v24, %v44
    %v46 = vmul.f32 %v29, %v44
    %v47 = vmul.f32 %v34, %v44
    %v48 = vmul.f32 %v39, %v44
    %49 = vset.pattern.permute.xlu0 1
    %50 = vperm.xlu0 %49, %v15
    %v51 = vpop.permute.xlu0 %50
    %53 = vset.pattern.permute.xlu0 1
    %54 = vperm.xlu0 %53, %v16
    %v55 = vpop.permute.xlu0 %54
    %57 = vset.pattern.permute.xlu0 1
    %58 = vperm.xlu0 %57, %v17
    %v59 = vpop.permute.xlu0 %58
    %61 = vset.pattern.permute.xlu0 1
    %62 = vperm.xlu0 %61, %v18
    %v63 = vpop.permute.xlu0 %62
    %v65 = vlaneseq
    %v66 = vshrl.u32 %v65, 7
    %v67 = vsub.s32 0, %v66
    %v68 = vrot.slane %v20, %v67
    %v69 = vmul.f32 %v51, %v68
    %v70 = vmul.f32 %v55, %v68
    %v71 = vmul.f32 %v59, %v68
    %v72 = vmul.f32 %v63, %v68
    %v73 = vadd.f32 %v45, %v69
    %v74 = vadd.f32 %v46, %v70
    %v75 = vadd.f32 %v47, %v71
    %v76 = vadd.f32 %v48, %v72
    %v77 = vmax.f32 %v73, 0.0
    %v78 = vmax.f32 %v74, 0.0
    %v79 = vmax.f32 %v75, 0.0
    %v80 = vmax.f32 %v76, 0.0
    %v81 = vld [vmem:[%s2] sm:$0x7]
    %vm82 = vcmask 261120
    %v84 = vsel %vm82, %v81, 0
    %86 = vmatprep.subr.mxu0 0.0
    %87 = vmatpush1.msra.mxu0 0.0
    %88 = vmatprep.subr.mxu0 0.0
    %89 = vmatpush1.msra.mxu0 0.0
    %90 = vmatprep.subr.mxu0 0.0
    %91 = vmatpush1.msra.mxu0 0.0
    %92 = vmatprep.subr.mxu0 0.0
    %93 = vmatpush1.msra.mxu0 0.0
    %94 = vmatprep.subr.mxu0 0.0
    %95 = vmatpush1.msra.mxu0 0.0
    %96 = vmatprep.subr.mxu0 0.0
    %97 = vmatpush1.msra.mxu0 0.0
    %98 = vmatprep.subr.mxu0 0.0
    %99 = vmatpush1.msra.mxu0 0.0
    %100 = vmatprep.subr.mxu0 0.0
    %101 = vmatpush1.msra.mxu0 0.0
    %102 = vmatprep.subr.mxu0 0.0
    %103 = vmatpush1.msra.mxu0 0.0
    %104 = vmatprep.subr.mxu0 0.0
    %105 = vmatpush1.msra.mxu0 0.0
    %106 = vmatprep.subr.mxu0 0.0
    %107 = vmatpush1.msra.mxu0 0.0
    %108 = vmatprep.subr.mxu0 0.0
    %109 = vmatpush1.msra.mxu0 0.0
    %110 = vmatprep.subr.mxu0 0.0
    %111 = vmatpush1.msra.mxu0 %v80
    %112 = vmatprep.subr.mxu0 0.0
    %113 = vmatpush1.msra.mxu0 %v79
    %114 = vmatprep.subr.mxu0 0.0
    %115 = vmatpush1.msra.mxu0 %v78
    %116 = vmatprep.subr.mxu0 0.0
    %117 = vmatpush1.msra.mxu0 %v77
    %118 = vmatprep.subr.mxu0 0.0
    %119 = vmatpush2.msra.mxu0 0.0
    %120 = vmatprep.subr.mxu0 0.0
    %121 = vmatpush2.msra.mxu0 0.0
    %122 = vmatprep.subr.mxu0 0.0
    %123 = vmatpush2.msra.mxu0 0.0
    %124 = vmatprep.subr.mxu0 0.0
    %125 = vmatpush2.msra.mxu0 0.0
    %126 = vmatprep.subr.mxu0 0.0
    %127 = vmatpush2.msra.mxu0 0.0
    %128 = vmatprep.subr.mxu0 0.0
    %129 = vmatpush2.msra.mxu0 0.0
    %130 = vmatprep.subr.mxu0 0.0
    %131 = vmatpush2.msra.mxu0 0.0
    %132 = vmatprep.subr.mxu0 0.0
    %133 = vmatpush2.msra.mxu0 0.0
    %134 = vmatprep.subr.mxu0 0.0
    %135 = vmatpush2.msra.mxu0 0.0
    %136 = vmatprep.subr.mxu0 0.0
    %137 = vmatpush2.msra.mxu0 0.0
    %138 = vmatprep.subr.mxu0 0.0
    %139 = vmatpush2.msra.mxu0 0.0
    %140 = vmatprep.subr.mxu0 0.0
    %141 = vmatpush2.msra.mxu0 0.0
    %142 = vmatprep.subr.mxu0 0.0
    %143 = vmatpush2.msra.mxu0 0.0
    %144 = vmatprep.subr.mxu0 0.0
    %145 = vmatpush2.msra.mxu0 0.0
    %146 = vmatprep.subr.mxu0 0.0
    %147 = vmatpush2.msra.mxu0 0.0
    %148 = vmatprep.subr.mxu0 0.0
    %149 = vmatpush2.msra.mxu0 0.0
    %150 = vmatprep.mubr.f32.mxu0 0.0
    %151 = vmatmul.mubr.f32.gmra.mxu0 %v84
    %v152 = vpop.f32.mrf.mxu0
    %v153 = vadd.f32 0.0, %v152
    %v154 = vpop.f32.mrf.mxu0
    %155 = vdwg.mxu0
    %v157 = vrot.slane %v153, 1
    %v159 = vmax.f32 %v153, %v157
    %v160 = vrot.slane %v153, 2
    %v162 = vmax.f32 %v159, %v160
    %v163 = vlaneseq
    %v164 = vshrl.u32 %v163, 7
    %v165 = vsub.s32 0, %v164
    %v166 = vrot.slane %v162, %v165
    %v167 = vsub.f32 %v153, %v166
    %v168 = vmul.f32 %v167, 1.442695
    %v169 = vpow.pop %v168
    %v171 = vrot.slane %v169, 1
    %v173 = vadd.f32 %v169, %v171
    %v174 = vrot.slane %v169, 2
    %v176 = vadd.f32 %v173, %v174
    %v177 = vrcp.pop %v176
    %v178 = vlaneseq
    %v179 = vshrl.u32 %v178, 7
    %v180 = vsub.s32 0, %v179
    %v181 = vrot.slane %v177, %v180
    %v182 = vmul.f32 %v169, %v181
    %183 = vst [vmem:[#allocation2] sm:$0x7] %v182
    // Predicated region
    $region14: #{tpu_custom_call.1} parent=1 // pred_check
      _
    $region15: #{tpu_custom_call.1} parent=1 // pred_check_branch
      %185 = sbr.rel (0) target = $region17
    $region16: #{tpu_custom_call.1} parent=1 // pred_region
      %s187 = ssub.s32 64, 64
      %188 = vsyncadd [#allocation3], %s187
      %s190 = sshll.u32 [#allocation2], 4
      %s191 = int_to_ptr.vmem [resolvable:$true] %s190
      %193 = dma.vmem_to_hbm [thread:$0]  %s191, 64, %s3, [#allocation3]
    $region17: #{tpu_custom_call.1} parent=1 // pred_fallthru
      _
    // Predicated region
    $region18: #{tpu_custom_call.1} parent=1 // pred_check
      _
    $region19: #{tpu_custom_call.1} parent=1 // pred_check_branch
      %195 = sbr.rel (0) target = $region21
    $region20: #{tpu_custom_call.1} parent=1 // pred_region
      %196 = dma.done [#allocation3], 64
    $region21: #{tpu_custom_call.1} parent=1 // pred_fallthru
      _
    %197 = vsyncpa [#allocation3], 1

</llo_original>
